<compile_context>
chip_gen: v7x
topology: tpu7x:2x2x1
jax: 0.10.0
libtpu: 0.0.40
codegen_flags: <defaults>
</compile_context>

<pallas_src>
import jax
import jax.numpy as jnp
from jax.experimental import pallas as pl
from jax.experimental.pallas import tpu as pltpu


def _downsample_kernel(x_ref, o_ref):
    # x_ref: (1, C, Hb, Wb); Wb == W  (only even-H rows were DMA'd), or
    #                        Wb == 2W (each row = [even-H row | odd-H row]).
    # o_ref: (1, 2C, Hb, W//2)
    c = o_ref.shape[1] // 2
    hb = o_ref.shape[2]
    w_half = o_ref.shape[3]
    w = 2 * w_half                        # width of one even-H input row

    # Slice the Ref, then load: only the even-H half travels VMEM -> vregs.
    even_h = x_ref[0, :, :, :w]           # (C, Hb, W)

    # Even-W subsample: static lane gather with a broadcast (1,1,W/2) index.
    # (A strided value slice even_h[:, :, ::2] is not guaranteed to lower.)
    idx = 2 * jax.lax.broadcasted_iota(jnp.int32, (1, 1, w_half), 2)
    sub = jnp.take_along_axis(even_h, jnp.broadcast_to(idx, (c, hb, w_half)), axis=2)

    o_ref[0, :c, :, :] = sub              # data half of the channels
    o_ref[0, c:, :, :] = sub * 0          # x.mul(0): propagates NaN/Inf like torch


def _num_tensorcores():
    """Best-effort TensorCore count (v7x/v4/v5p: 2; v5e/v6e: 1). Never raises."""
    try:
        info = pltpu.get_tpu_info()
        for attr in ("num_tensorcores", "tensorcore_count", "num_cores", "core_count"):
            v = getattr(info, attr, None)
            if v is not None and int(v) > 0:
                return int(v)
    except Exception:
        pass
    try:
        kind = jax.devices()[0].device_kind.lower()
        if ("v4" in kind) or ("v5p" in kind) or ("7" in kind):
            return 2
    except Exception:
        pass
    return 1


def _pick_row_block(h_out, n_batch, in_row_bytes, target_bytes, sublane_mult, min_steps):
    """Largest legal Hb (output rows per grid step).

    Legal = divides H_out and (multiple of `sublane_mult` or equal to H_out)
    -- the Mosaic second-minor-dim rule, dtype-aware.  Prefer <= `target_bytes`
    of input per step and at least `min_steps` total grid steps (>= 2 steps per
    TensorCore on multi-TC chips so double-buffering overlaps; a single big
    block on single-TC chips).
    """
    fallback = h_out
    for hb in range(h_out, 0, -1):
        if h_out % hb or (hb != h_out and hb % sublane_mult):
            continue
        fallback = hb  # smallest legal so far (loop is descending)
        if hb * in_row_bytes <= target_bytes and n_batch * (h_out // hb) >= min_steps:
            return hb
    return fallback


def resnet_downsample(x, *, target_bytes=4 << 20):
    """Forward of ResNetDownSample(stride=2). Input/output are NCHW (PyTorch layout)."""
    n, c, h, w = x.shape
    assert h % 2 == 0 and w % 2 == 0, "stride-2 downsample expects even H and W"
    h_out, w_out = h // 2, w // 2
    itemsize = x.dtype.itemsize

    # Free, row-major view: row r of the last dim holds [H row 2r | H row 2r+1].
    x_rows = x.reshape(n, c, h_out, 2 * w)

    # Even-H-only read path: legal iff the W-wide block satisfies the 128-lane
    # rule, and worth it iff the per-row contiguous DMA chunk is >= 256 B.
    even_h_only = (w % 128 == 0) and (w * itemsize >= 256)
    w_blk = w if even_h_only else 2 * w

    # Dtype-aware sublane multiple (packing) and core-count-aware step minimum.
    sublane_mult = {4: 8, 2: 16, 1: 32}.get(itemsize, 8)
    num_tc = _num_tensorcores()
    min_steps = 2 * num_tc if num_tc > 1 else 1

    in_row_bytes = c * w_blk * itemsize
    hb = _pick_row_block(h_out, n, in_row_bytes, target_bytes, sublane_mult, min_steps)
    grid = (n, h_out // hb)

    in_block_bytes = hb * in_row_bytes
    out_block_bytes = 2 * c * hb * w_out * itemsize
    vmem_need = 2 * (in_block_bytes + out_block_bytes) + (2 << 20)  # double-buffered + margin
    vmem_limit = int(min(48 << 20, max(vmem_need, 16 << 20)))

    bytes_accessed = (n * c * h_out * w_blk + n * 2 * c * h_out * w_out) * itemsize

    return pl.pallas_call(
        _downsample_kernel,
        out_shape=jax.ShapeDtypeStruct((n, 2 * c, h_out, w_out), x.dtype),
        grid=grid,
        in_specs=[
            pl.BlockSpec((1, c, hb, w_blk), lambda b, i: (b, 0, i, 0)),
        ],
        out_specs=pl.BlockSpec((1, 2 * c, hb, w_out), lambda b, i: (b, 0, i, 0)),
        compiler_params=pltpu.CompilerParams(
            dimension_semantics=("parallel", "parallel"),
            vmem_limit_bytes=vmem_limit,
        ),
        cost_estimate=pl.CostEstimate(
            flops=0, transcendentals=0, bytes_accessed=int(bytes_accessed)
        ),
    )(x_rows)


if __name__ == "__main__":
    # ResNetDownSample has no learnable parameters; nothing to initialize.
    key = jax.random.PRNGKey(0)
    key_main, key_wide = jax.random.split(key)

    def reference(x):
        sub = x[:, :, ::2, ::2]
        return jnp.concatenate([sub, jnp.zeros_like(sub)], axis=1)

    # Main test shape (NCHW), f32.
    x = jax.random.normal(key_main, (2, 4, 16, 16), dtype=jnp.float32)
    out = jax.block_until_ready(resnet_downsample(x))
    assert out.shape == (2, 8, 8, 8), out.shape
    assert jnp.array_equal(out, reference(x)), "float32 mismatch vs reference"

    # bfloat16 coverage (sub-32-bit sublane-packing path).
    xb = x.astype(jnp.bfloat16)
    out_b = jax.block_until_ready(resnet_downsample(xb))
    assert jnp.array_equal(out_b, reference(xb)), "bfloat16 mismatch vs reference"

    # Wide-W shape exercising the even-H-only read path (W % 128 == 0),
    # which skips the odd-H rows in the HBM->VMEM DMA entirely.
    x_wide = jax.random.normal(key_wide, (1, 4, 16, 128), dtype=jnp.float32)
    out_w = jax.block_until_ready(resnet_downsample(x_wide))
    assert out_w.shape == (1, 8, 8, 64), out_w.shape
    assert jnp.array_equal(out_w, reference(x_wide)), "wide-W mismatch vs reference"

    print("KERNEL_OK")
</pallas_src>

<mosaic_0001>
module attributes {stable_mosaic.version = 11 : i64} {
  func.func @_downsample_kernel(%arg0: i32, %arg1: i32, %arg2: memref<1x4x8x32xf32, #tpu.memory_space<vmem>>, %arg3: memref<1x8x8x8xf32, #tpu.memory_space<vmem>>) attributes {dimension_semantics = [#tpu.dimension_semantics<parallel>, #tpu.dimension_semantics<parallel>], iteration_bounds = array<i64: 2, 1>, scalar_prefetch = 0 : i64, scratch_operands = 0 : i64, tpu.core_type = #tpu.core_type<tc>, window_params = [{transform_indices = @transform_0, window_bounds = array<i64: 1, 4, 8, 32>}, {transform_indices = @transform_1, window_bounds = array<i64: 1, 8, 8, 8>}]} {
    %c0 = arith.constant 0 : index
    %c0_0 = arith.constant 0 : index
    %c0_1 = arith.constant 0 : index
    %c0_2 = arith.constant 0 : index
    %0 = vector.load %arg2[%c0, %c0_0, %c0_1, %c0_2] : memref<1x4x8x32xf32, #tpu.memory_space<vmem>>, vector<1x4x8x16xf32>
    %1 = vector.shape_cast %0 : vector<1x4x8x16xf32> to vector<4x8x16xf32>
    %2 = tpu.iota {dimensions = array<i32: 2>} : vector<1x1x8xi32>
    %c2_i32 = arith.constant 2 : i32
    %3 = vector.broadcast %c2_i32 : i32 to vector<1x1x8xi32>
    %4 = arith.muli %3, %2 : vector<1x1x8xi32>
    %5 = vector.shape_cast %4 : vector<1x1x8xi32> to vector<1x1x8xi32>
    %6 = vector.broadcast %5 : vector<1x1x8xi32> to vector<4x8x8xi32>
    %c0_i32 = arith.constant 0 : i32
    %7 = vector.broadcast %c0_i32 : i32 to vector<4x8x8xi32>
    %8 = arith.cmpi slt, %6, %7 : vector<4x8x8xi32>
    %c16_i32 = arith.constant 16 : i32
    %9 = vector.broadcast %c16_i32 : i32 to vector<4x8x8xi32>
    %10 = arith.addi %6, %9 : vector<4x8x8xi32>
    %11 = arith.select %8, %10, %6 : vector<4x8x8xi1>, vector<4x8x8xi32>
    %12 = vector.shape_cast %11 : vector<4x8x8xi32> to vector<4x8x8x1xi32>
    %13 = vector.shape_cast %12 : vector<4x8x8x1xi32> to vector<4x8x8xi32>
    %14 = tpu.dynamic_gather %1[%13] in [2] : vector<4x8x16xf32>, vector<4x8x8xi32> -> vector<4x8x8xf32>
    %c0_3 = arith.constant 0 : index
    %c0_4 = arith.constant 0 : index
    %c0_5 = arith.constant 0 : index
    %c0_6 = arith.constant 0 : index
    %15 = vector.load %arg3[%c0_3, %c0_4, %c0_5, %c0_6] : memref<1x8x8x8xf32, #tpu.memory_space<vmem>>, vector<1x4x8x8xf32>
    %16 = vector.shape_cast %15 : vector<1x4x8x8xf32> to vector<4x8x8xf32>
    %17 = vector.shape_cast %14 : vector<4x8x8xf32> to vector<1x4x8x8xf32>
    tpu.vector_store %arg3[%c0_3, %c0_4, %c0_5, %c0_6], %17 {strides = array<i32>} : memref<1x8x8x8xf32, #tpu.memory_space<vmem>>, vector<1x4x8x8xf32>,
    %cst = arith.constant 0.000000e+00 : f32
    %18 = vector.broadcast %cst : f32 to vector<4x8x8xf32>
    %19 = arith.mulf %14, %18 : vector<4x8x8xf32>
    %c0_7 = arith.constant 0 : index
    %c4 = arith.constant 4 : index
    %c0_8 = arith.constant 0 : index
    %c0_9 = arith.constant 0 : index
    %20 = vector.load %arg3[%c0_7, %c4, %c0_8, %c0_9] : memref<1x8x8x8xf32, #tpu.memory_space<vmem>>, vector<1x4x8x8xf32>
    %21 = vector.shape_cast %20 : vector<1x4x8x8xf32> to vector<4x8x8xf32>
    %22 = vector.shape_cast %19 : vector<4x8x8xf32> to vector<1x4x8x8xf32>
    tpu.vector_store %arg3[%c0_7, %c4, %c0_8, %c0_9], %22 {strides = array<i32>} : memref<1x8x8x8xf32, #tpu.memory_space<vmem>>, vector<1x4x8x8xf32>,
    return
  }
  func.func @transform_0(%arg0: i32, %arg1: i32) -> (i32, i32, i32, i32) {
    %c0_i32 = arith.constant 0 : i32
    %c0_i32_0 = arith.constant 0 : i32
    %c0_i32_1 = arith.constant 0 : i32
    return %arg0, %c0_i32, %arg1, %c0_i32_0 : i32, i32, i32, i32
  }
  func.func @transform_1(%arg0: i32, %arg1: i32) -> (i32, i32, i32, i32) {
    %c0_i32 = arith.constant 0 : i32
    %c0_i32_0 = arith.constant 0 : i32
    %c0_i32_1 = arith.constant 0 : i32
    return %arg0, %c0_i32, %arg1, %c0_i32_0 : i32, i32, i32, i32
  }
}

</mosaic_0001>

<llo_original>
// kernel: tpu_custom_call.1
$region0: #{tpu_custom_call.1}
  #allocation0 [shape = 'u32[]', space=smem, size = 0x4, offset = 0x4, fixed_abs, tag = 'smem constant byte address 0x4 - core index']
  #allocation1 [shape = 'u32[144,128]{1,0:T(1,128)}', space=vmem, size = 0x12000, scoped, tag = 'internal scratch']
  %s0 = inlined_call_operand.hbm [shape: f32[2,4,8,32], index: 0, kind: input, shape index: {}]
  %s1 = inlined_call_operand.hbm [shape: f32[2,8,8,8], index: 1, kind: output, shape index: {}]
  %s2 = sld [smem:[#allocation0]]
  $region41: #{tpu_custom_call.1} parent=0
    _
  %s4 = ssub.s32 1, %s2
  %s5 = scalar_select 0, %s4, %s2
  $region1: #{tpu_custom_call.1} parent=0
    #allocation2 [shape = 'u8[32768]{0}', space=vmem, size = 0x8000, scoped, tag = 'input window, operand 0']
    #allocation3 [shape = 's32[2]{0}', space=sflag, size = 0x8, scoped, tag = 'scoped memory for tpu_custom_call.1']
    #allocation4 [shape = 's32[2]{0}', space=sflag, size = 0x8, scoped, tag = 'scoped memory for tpu_custom_call.1']
    #allocation5 [shape = 'u8[65536]{0}', space=vmem, size = 0x10000, scoped, tag = 'output window, operand 0']
    %6 = vsyncpa [#allocation3], 0
    %s7 = scalar_lea.sflag [#allocation3], 1
    %8 = vsyncpa %s7, 0
    %9 = vsyncpa [#allocation4], 0
    %s10 = scalar_lea.sflag [#allocation4], 1
    %11 = vsyncpa %s10, 0
    loop: start=0, step=1, limit=4
    $region2: #{tpu_custom_call.1} parent=1 // loop_pre_header
      _
    $region3: #{tpu_custom_call.1} parent=1 // loop_header
      %s13 = sphi 0, %s17
      %p14 = scmp.ge.s32.totalorder %s13, 4
      %s20 = sphi 0, %s32
      %s21 = sphi 0, %s28
      %s22 = sphi 0, %s20
      %s23 = sphi 0, %s21
      %s24 = sphi 0, %s22
      %s25 = sphi 0, %s23
      %s37 = sphi 0, %s39
      %s40 = sphi 0, %s37
      %s41 = sphi 0, %s40
      %s57 = sphi 0, %s41
      %s65 = sphi 0, %s67
      %s68 = sphi 0, %s65
      %s69 = sphi 0, %s68
      %s85 = sphi 0, %s69
    $region4: #{tpu_custom_call.1} parent=1 // loop_header_branch
      %16 = sbr.rel (%p14) target = $region8
    $region5: #{tpu_custom_call.1} parent=1 // loop_body
      %s18 = ssub.s32 %s13, 1
      %s19 = ssub.s32 %s13, 2
      %s26 = sadd.s32 1, %s21
      %p27 = scmp.ge.s32.totalorder %s26, 1
      %s28 = scalar_select %p27, 0, %s26
      %s29 = sadd.s32 1, %s20
      %s30 = scalar_select %p27, %s29, %s20
      %p31 = scmp.ge.s32.totalorder %s30, 2
      %s32 = scalar_select %p31, 0, %s30
      %s33 = ssub.s32 %s20, %s32
      %s34 = ssub.s32 %s21, %s28
      %s35 = sor.u32 %s33, %s34
      %p36 = scmp.eq.s32.totalorder %s35, 0
      %s38 = sadd.s32 %s37, 1
      %s39 = scalar_select %p36, %s37, %s38
      %p42 = pneg %p36
      %p43 = scmp.eq.s32.totalorder %s13, 1
      %p44 = por %p42, %p43
      %p45 = scmp.ne.s32.totalorder %s37, %s40
      %p46 = scmp.eq.s32.totalorder %s13, 0
      %p47 = por %p45, %p46
      %p48 = scmp.ne.s32.totalorder %s37, %s40
      %p49 = scmp.eq.s32.totalorder %s18, 1
      %p50 = por %p48, %p49
      %p51 = scmp.ne.s32.totalorder %s40, %s41
      %p52 = scmp.eq.s32.totalorder %s18, 0
      %p53 = por %p51, %p52
      %p54 = scmp.ne.s32.totalorder %s40, %s41
      %p55 = scmp.eq.s32.totalorder %s19, 1
      %p56 = por %p54, %p55
      %p58 = scmp.ne.s32.totalorder %s41, %s57
      %p59 = scmp.eq.s32.totalorder %s19, 0
      %p60 = por %p58, %p59
      %s61 = ssub.s32 %s20, %s32
      %s62 = ssub.s32 %s21, %s28
      %s63 = sor.u32 %s61, %s62
      %p64 = scmp.eq.s32.totalorder %s63, 0
      %s66 = sadd.s32 %s65, 1
      %s67 = scalar_select %p64, %s65, %s66
      %p70 = pneg %p64
      %p71 = scmp.eq.s32.totalorder %s13, 1
      %p72 = por %p70, %p71
      %p73 = scmp.ne.s32.totalorder %s65, %s68
      %p74 = scmp.eq.s32.totalorder %s13, 0
      %p75 = por %p73, %p74
      %p76 = scmp.ne.s32.totalorder %s65, %s68
      %p77 = scmp.eq.s32.totalorder %s18, 1
      %p78 = por %p76, %p77
      %p79 = scmp.ne.s32.totalorder %s68, %s69
      %p80 = scmp.eq.s32.totalorder %s18, 0
      %p81 = por %p79, %p80
      %p82 = scmp.ne.s32.totalorder %s68, %s69
      %p83 = scmp.eq.s32.totalorder %s19, 1
      %p84 = por %p82, %p83
      %p86 = scmp.ne.s32.totalorder %s69, %s85
      %p87 = scmp.eq.s32.totalorder %s19, 0
      %p88 = por %p86, %p87
      %p89 = scmp.le.s32.totalorder 1, %s13
      %p90 = scmp.lt.s32.totalorder %s13, 3
      %p91 = pnand %p89, %p90
      %p92 = pneg %p91
      // Predicated region
      $region9: #{tpu_custom_call.1} parent=5 // pred_check
        _
      $region10: #{tpu_custom_call.1} parent=5 // pred_check_branch
        %94 = sbr.rel (%p91) target = $region12
      $region11: #{tpu_custom_call.1} parent=5 // pred_region
        %s95 = ssub.s32 %s13, 1
      $region12: #{tpu_custom_call.1} parent=5 // pred_fallthru
        _
      %p96 = scmp.lt.s32.totalorder %s13, 2
      // Predicated region
      $region13: #{tpu_custom_call.1} parent=5 // pred_check
        %p97 = pneg %p96
      $region14: #{tpu_custom_call.1} parent=5 // pred_check_branch
        %99 = sbr.rel (%p97) target = $region16
      $region15: #{tpu_custom_call.1} parent=5 // pred_region
        // Predicated region
        $region17: #{tpu_custom_call.1} parent=15 // pred_check
          %p100 = pneg %p47
        $region18: #{tpu_custom_call.1} parent=15 // pred_check_branch
          %102 = sbr.rel (%p100) target = $region20
        $region19: #{tpu_custom_call.1} parent=15 // pred_region
          %s103 = sand.u32 %s37, 1
          %s104 = scalar_lea.sflag [#allocation3], %s103
          %s105 = sand.u32 %s37, 1
          %s106 = smul.addr %s105, 32
          %s107 = scalar_lea.vmem [#allocation2], %s106
          %s109 = ssub.s32 512, 512
          %110 = vsyncadd %s104, %s109
          %s111 = smul.addr %s20, 4
          %s112 = sadd.s32 %s21, %s111
          %s113 = smul.addr %s112, 128
          %s114 = scalar_lea.hbm %s0, %s113
          %s115 = sshll.u32 %s107, 4
          %s116 = int_to_ptr.vmem [resolvable:$true] %s115
          %121 = dma.hbm_to_vmem [thread:$0]  %s114, 512, %s116, %s104, 128, 128, 8
        $region20: #{tpu_custom_call.1} parent=15 // pred_fallthru
          _
      $region16: #{tpu_custom_call.1} parent=5 // pred_fallthru
        _
      %p122 = scmp.le.s32.totalorder 1, %s13
      %p123 = scmp.lt.s32.totalorder %s13, 3
      %p124 = pnand %p122, %p123
      %p125 = pneg %p124
      // Predicated region
      $region21: #{tpu_custom_call.1} parent=5 // pred_check
        _
      $region22: #{tpu_custom_call.1} parent=5 // pred_check_branch
        %127 = sbr.rel (%p124) target = $region24
      $region23: #{tpu_custom_call.1} parent=5 // pred_region
        %s128 = ssub.s32 %s13, 1
        %s129 = sand.u32 %s40, 1
        %s130 = scalar_lea.sflag [#allocation3], %s129
        %s131 = sand.u32 %s40, 1
        %s132 = smul.addr %s131, 32
        %s133 = scalar_lea.vmem [#allocation2], %s132
        // Predicated region
        $region25: #{tpu_custom_call.1} parent=23 // pred_check
          %p134 = pneg %p53
        $region26: #{tpu_custom_call.1} parent=23 // pred_check_branch
          %136 = sbr.rel (%p134) target = $region28
        $region27: #{tpu_custom_call.1} parent=23 // pred_region
          %137 = dma.done %s130, 512
        $region28: #{tpu_custom_call.1} parent=23 // pred_fallthru
          _
        %s138 = sand.u32 %s40, 1
        %s139 = scalar_lea.sflag [#allocation3], %s138
        %s140 = sand.u32 %s40, 1
        %s141 = smul.addr %s140, 32
        %s142 = scalar_lea.vmem [#allocation2], %s141
        %p143 = pneg %p53
        %p144 = pneg %p50
        %p145 = pneg %p81
        %p146 = pneg %p78
        %s147 = sand.u32 %s68, 1
        %s148 = scalar_lea.sflag [#allocation4], %s147
        %s149 = sand.u32 %s68, 1
        %s150 = smul.addr %s149, 64
        %s151 = scalar_lea.vmem [#allocation5], %s150
        %v152 = vld [vmem:[%s133] sm:$0xff]
        %v153 = vld [vmem:[%s133 + $0x8] sm:$0xff]
        %v154 = vld [vmem:[%s133 + $0x10] sm:$0xff]
        %v155 = vld [vmem:[%s133 + $0x18] sm:$0xff]
        %v156 = vlaneseq
        %v157 = vand.u32 %v156, 127
        %v158 = vmul.u32 %v157, 2
        %vm159 = vcmp.lt.s32.totalorder %v158, 0
        %v160 = vadd.s32 %v158, 16
        %v161 = vsel %vm159, %v160, %v158
        %162 = vset.pattern.permute.xlu0 %v161
        %163 = vperm.xlu0 %162, %v152
        %v164 = vpop.permute.xlu0 %163
        %165 = vset.pattern.permute.xlu0 %v161
        %166 = vperm.xlu0 %165, %v153
        %v167 = vpop.permute.xlu0 %166
        %168 = vset.pattern.permute.xlu0 %v161
        %169 = vperm.xlu0 %168, %v154
        %v170 = vpop.permute.xlu0 %169
        %171 = vset.pattern.permute.xlu0 %v161
        %172 = vperm.xlu0 %171, %v155
        %v173 = vpop.permute.xlu0 %172
        %vm174 = vcmask 64512
        %175 = vst.msk [vmem:[%s151] sm:$0xff] %vm174, %v164
        %176 = vst.msk [vmem:[%s151 + $0x8] sm:$0xff] %vm174, %v167
        %177 = vst.msk [vmem:[%s151 + $0x10] sm:$0xff] %vm174, %v170
        %178 = vst.msk [vmem:[%s151 + $0x18] sm:$0xff] %vm174, %v173
        %v179 = vmul.f32 %v164, 0.0
        %v180 = vmul.f32 %v167, 0.0
        %v181 = vmul.f32 %v170, 0.0
        %v182 = vmul.f32 %v173, 0.0
        %s183 = scalar_lea.vmem %s151, 32 [#allocation5]
        %184 = vst.msk [vmem:[%s183] sm:$0xff] %vm174, %v179
        %185 = vst.msk [vmem:[%s183 + $0x8] sm:$0xff] %vm174, %v180
        %186 = vst.msk [vmem:[%s183 + $0x10] sm:$0xff] %vm174, %v181
        %187 = vst.msk [vmem:[%s183 + $0x18] sm:$0xff] %vm174, %v182
        %s188 = sand.u32 %s68, 1
        %s189 = scalar_lea.sflag [#allocation4], %s188
        %s190 = sand.u32 %s68, 1
        %s191 = smul.addr %s190, 64
        %s192 = scalar_lea.vmem [#allocation5], %s191
        // Predicated region
        $region29: #{tpu_custom_call.1} parent=23 // pred_check
          %p193 = pneg %p78
        $region30: #{tpu_custom_call.1} parent=23 // pred_check_branch
          %195 = sbr.rel (%p193) target = $region32
        $region31: #{tpu_custom_call.1} parent=23 // pred_region
          %s197 = ssub.s32 1024, 1024
          %198 = vsyncadd %s189, %s197
          %s199 = smul.addr %s22, 8
          %s200 = sadd.s32 %s23, %s199
          %s201 = smul.addr %s200, 128
          %s202 = scalar_lea.hbm %s1, %s201
          %s203 = sshll.u32 %s192, 4
          %s204 = int_to_ptr.vmem [resolvable:$true] %s203
          %209 = dma.vmem_to_hbm [thread:$0]  %s204, 1024, %s202, %s189, 128, 128, 8
        $region32: #{tpu_custom_call.1} parent=23 // pred_fallthru
          _
      $region24: #{tpu_custom_call.1} parent=5 // pred_fallthru
        _
      %p210 = scmp.le.s32.totalorder 2, %s13
      // Predicated region
      $region33: #{tpu_custom_call.1} parent=5 // pred_check
        %p211 = pneg %p210
      $region34: #{tpu_custom_call.1} parent=5 // pred_check_branch
        %213 = sbr.rel (%p211) target = $region36
      $region35: #{tpu_custom_call.1} parent=5 // pred_region
        %s214 = ssub.s32 %s13, 2
        // Predicated region
        $region37: #{tpu_custom_call.1} parent=35 // pred_check
          %p215 = pneg %p84
        $region38: #{tpu_custom_call.1} parent=35 // pred_check_branch
          %217 = sbr.rel (%p215) target = $region40
        $region39: #{tpu_custom_call.1} parent=35 // pred_region
          %s218 = sand.u32 %s69, 1
          %s219 = scalar_lea.sflag [#allocation4], %s218
          %s220 = sand.u32 %s69, 1
          %s221 = smul.addr %s220, 64
          %s222 = scalar_lea.vmem [#allocation5], %s221
          %223 = dma.done %s219, 1024
        $region40: #{tpu_custom_call.1} parent=35 // pred_fallthru
          _
      $region36: #{tpu_custom_call.1} parent=5 // pred_fallthru
        _
    $region6: #{tpu_custom_call.1} parent=1 // loop_footer
      %s17 = sadd.s32 1, %s13
    $region7: #{tpu_custom_call.1} parent=1 // loop_footer_branch
      %12 = sbr.rel target = $region3
    $region8: #{tpu_custom_call.1} parent=1 // loop_exit
      _
    %224 = vsyncpa [#allocation3], 1
    %s225 = scalar_lea.sflag [#allocation3], 1
    %226 = vsyncpa %s225, 1
    %227 = vsyncpa [#allocation4], 1
    %s228 = scalar_lea.sflag [#allocation4], 1
    %229 = vsyncpa %s228, 1

</llo_original>
